<compile_context>
chip_gen: v5e
topology: v5e:2x2
jax: 0.10.0
libtpu: 0.0.40
codegen_flags: <defaults>
</compile_context>

<pallas_src>
import jax
import jax.numpy as jnp
from jax.experimental import pallas as pl
from jax.experimental.pallas import tpu as pltpu


def _round_up(n, m):
    return ((n + m - 1) // m) * m


def _mlp_kernel(x_ref, y_ref, w1x_ref, w1y_ref, b1_ref,
                w2_ref, b2_ref, w3_ref, b3_ref, o_ref):
    # fc1: x part on the MXU (bf16 in / f32 acc); the y column of fc1 is a
    # VPU broadcast outer-product (this replaces torch.cat([x, y[:, None]])).
    h1 = jnp.dot(x_ref[...].astype(jnp.bfloat16), w1x_ref[...],
                 preferred_element_type=jnp.float32)
    h1 = h1 + y_ref[...] * w1y_ref[...]            # (TB,1)*(1,H) -> (TB,H)
    h1 = jnp.maximum(h1 + b1_ref[...], 0.0)        # f32 epilogue

    # fc2 + ReLU
    h2 = jnp.dot(h1.astype(jnp.bfloat16), w2_ref[...],
                 preferred_element_type=jnp.float32)
    h2 = jnp.maximum(h2 + b2_ref[...], 0.0)

    # fc3 (lane-padded output, no activation)
    out = jnp.dot(h2.astype(jnp.bfloat16), w3_ref[...],
                  preferred_element_type=jnp.float32)
    o_ref[...] = (out + b3_ref[...]).astype(o_ref.dtype)


def simple_mlp_forward(x, t, y, params, *, tb=512):
    """Pallas implementation of SimpleMLP.forward(x, t, y).

    x: (B, x_dim) f32; t: (B,) unused; y: (B,) f32.
    params: w1 (x_dim+1, H), b1 (1, H), w2 (H, H), b2 (1, H),
            w3 (H, O), b3 (1, O) -- weights stored as (in, out).
    """
    del t  # unused by the reference forward pass
    B, x_dim = x.shape
    w1 = params["w1"]
    H = w1.shape[1]
    O = params["w3"].shape[1]

    # --- fold the concat into fc1: split W1 into x rows and the y row ---
    w1x = w1[:x_dim].astype(jnp.bfloat16)          # (x_dim, H)  MXU operand
    w1y = w1[x_dim:]                               # (1, H)      f32, VPU
    w2 = params["w2"].astype(jnp.bfloat16)
    b1, b2 = params["b1"], params["b2"]

    # --- lane-dense output: pad O up to a multiple of 128 ---
    OP = _round_up(max(O, 128), 128)
    w3 = jnp.pad(params["w3"], ((0, 0), (0, OP - O))).astype(jnp.bfloat16)
    b3 = jnp.pad(params["b3"], ((0, 0), (0, OP - O)))

    # --- batch tiling (zero-pad the ragged tail; padded rows sliced off) ---
    TB = min(tb, _round_up(B, 8))
    BP = _round_up(B, TB)
    if BP != B:
        x = jnp.pad(x, ((0, BP - B), (0, 0)))
        y = jnp.pad(y, (0, BP - B))
    y2 = y[:, None].astype(jnp.float32)            # (BP, 1)

    tile = lambda i: (i, 0)    # activations: stream over the batch
    const = lambda i: (0, 0)   # weights/biases: resident across the grid

    out = pl.pallas_call(
        _mlp_kernel,
        out_shape=jax.ShapeDtypeStruct((BP, OP), jnp.float32),
        grid=(BP // TB,),
        in_specs=[
            pl.BlockSpec((TB, x_dim), tile),
            pl.BlockSpec((TB, 1), tile),
            pl.BlockSpec((x_dim, H), const),
            pl.BlockSpec((1, H), const),
            pl.BlockSpec((1, H), const),
            pl.BlockSpec((H, H), const),
            pl.BlockSpec((1, H), const),
            pl.BlockSpec((H, OP), const),
            pl.BlockSpec((1, OP), const),
        ],
        out_specs=pl.BlockSpec((TB, OP), tile),
        compiler_params=pltpu.CompilerParams(
            dimension_semantics=("parallel",),     # v7x: shard batch over 2 TCs
        ),
    )(x, y2, w1x, w1y, b1, w2, b2, w3, b3)

    return out[:B, :O]


def init_params(key, input_dim, output_dim, hidden_dim=128):
    """Deterministic init mimicking nn.Linear (uniform +-1/sqrt(fan_in)).

    Weights are stored transposed as (in_features, out_features)."""
    ks = jax.random.split(key, 6)

    def linear(kw, kb, fan_in, fan_out):
        bound = 1.0 / jnp.sqrt(fan_in)
        w = jax.random.uniform(kw, (fan_in, fan_out), jnp.float32, -bound, bound)
        b = jax.random.uniform(kb, (1, fan_out), jnp.float32, -bound, bound)
        return w, b

    w1, b1 = linear(ks[0], ks[1], input_dim, hidden_dim)
    w2, b2 = linear(ks[2], ks[3], hidden_dim, hidden_dim)
    w3, b3 = linear(ks[4], ks[5], hidden_dim, output_dim)
    return {"w1": w1, "b1": b1, "w2": w2, "b2": b2, "w3": w3, "b3": b3}


def _reference_forward(x, t, y, params):
    """Pure-JAX f32 reference for correctness checking."""
    del t
    xin = jnp.concatenate([x, y[:, None]], axis=-1)
    h1 = jnp.maximum(xin @ params["w1"] + params["b1"], 0.0)
    h2 = jnp.maximum(h1 @ params["w2"] + params["b2"], 0.0)
    return h2 @ params["w3"] + params["b3"]


if __name__ == "__main__":
    key = jax.random.PRNGKey(0)
    k_x, k_t, k_y, k_p = jax.random.split(key, 4)

    # Small shapes consistent with the forward: input_dim = x_dim + 1.
    batch = 300          # ragged vs TB=128 -> exercises padding + 3-step grid
    x_dim = 7
    input_dim = x_dim + 1
    hidden_dim = 128     # module default; fills the (8,128) lane tile
    output_dim = 4

    x = jax.random.normal(k_x, (batch, x_dim), jnp.float32)
    t = jax.random.randint(k_t, (batch,), 0, 1000)   # unused by forward
    y = jax.random.normal(k_y, (batch,), jnp.float32)

    params = init_params(k_p, input_dim, output_dim, hidden_dim)

    out = simple_mlp_forward(x, t, y, params, tb=128)
    out = jax.block_until_ready(out)

    ref = _reference_forward(x, t, y, params)
    assert out.shape == (batch, output_dim)
    # bf16 MXU operands with f32 accumulation -> tolerance loosened vs f32 ref.
    assert jnp.allclose(out, ref, atol=5e-2, rtol=5e-2), float(
        jnp.max(jnp.abs(out - ref)))

    print("KERNEL_OK")
</pallas_src>

<mosaic_0001>
module attributes {stable_mosaic.version = 11 : i64} {
  func.func @_mlp_kernel(%arg0: i32, %arg1: memref<128x7xf32, #tpu.memory_space<vmem>>, %arg2: memref<128x1xf32, #tpu.memory_space<vmem>>, %arg3: memref<7x128xbf16, #tpu.memory_space<vmem>>, %arg4: memref<1x128xf32, #tpu.memory_space<vmem>>, %arg5: memref<1x128xf32, #tpu.memory_space<vmem>>, %arg6: memref<128x128xbf16, #tpu.memory_space<vmem>>, %arg7: memref<1x128xf32, #tpu.memory_space<vmem>>, %arg8: memref<128x128xbf16, #tpu.memory_space<vmem>>, %arg9: memref<1x128xf32, #tpu.memory_space<vmem>>, %arg10: memref<128x128xf32, #tpu.memory_space<vmem>>) attributes {dimension_semantics = [#tpu.dimension_semantics<parallel>], iteration_bounds = array<i64: 3>, scalar_prefetch = 0 : i64, scratch_operands = 0 : i64, tpu.core_type = #tpu.core_type<tc>, window_params = [{transform_indices = @transform_0, window_bounds = array<i64: 128, 7>}, {transform_indices = @transform_1, window_bounds = array<i64: 128, 1>}, {pipeline_mode = #tpu.pipeline_mode<synchronous>, transform_indices = @transform_2, window_bounds = array<i64: 7, 128>}, {pipeline_mode = #tpu.pipeline_mode<synchronous>, transform_indices = @transform_3, window_bounds = array<i64: 1, 128>}, {pipeline_mode = #tpu.pipeline_mode<synchronous>, transform_indices = @transform_4, window_bounds = array<i64: 1, 128>}, {pipeline_mode = #tpu.pipeline_mode<synchronous>, transform_indices = @transform_5, window_bounds = array<i64: 128, 128>}, {pipeline_mode = #tpu.pipeline_mode<synchronous>, transform_indices = @transform_6, window_bounds = array<i64: 1, 128>}, {pipeline_mode = #tpu.pipeline_mode<synchronous>, transform_indices = @transform_7, window_bounds = array<i64: 128, 128>}, {pipeline_mode = #tpu.pipeline_mode<synchronous>, transform_indices = @transform_8, window_bounds = array<i64: 1, 128>}, {transform_indices = @transform_9, window_bounds = array<i64: 128, 128>}]} {
    %c0 = arith.constant 0 : index
    %c0_0 = arith.constant 0 : index
    %0 = vector.load %arg1[%c0, %c0_0] : memref<128x7xf32, #tpu.memory_space<vmem>>, vector<128x7xf32>
    %1 = arith.truncf %0 : vector<128x7xf32> to vector<128x7xbf16>
    %c0_1 = arith.constant 0 : index
    %c0_2 = arith.constant 0 : index
    %2 = vector.load %arg3[%c0_1, %c0_2] : memref<7x128xbf16, #tpu.memory_space<vmem>>, vector<7x128xbf16>
    %cst = arith.constant dense<0.000000e+00> : vector<128x128xf32>
    %3 = tpu.matmul %1, %2, %cst {dimension_numbers = #tpu.dot_dimension_numbers<[1], [0], [0], [1], [0, 0, 1, 1], [], []>} : vector<128x7xbf16>, vector<7x128xbf16>, vector<128x128xf32> -> vector<128x128xf32>
    %c0_3 = arith.constant 0 : index
    %c0_4 = arith.constant 0 : index
    %4 = vector.load %arg2[%c0_3, %c0_4] : memref<128x1xf32, #tpu.memory_space<vmem>>, vector<128x1xf32>
    %c0_5 = arith.constant 0 : index
    %c0_6 = arith.constant 0 : index
    %5 = vector.load %arg4[%c0_5, %c0_6] : memref<1x128xf32, #tpu.memory_space<vmem>>, vector<1x128xf32>
    %6 = vector.broadcast %4 : vector<128x1xf32> to vector<128x128xf32>
    %7 = vector.broadcast %5 : vector<1x128xf32> to vector<128x128xf32>
    %8 = arith.mulf %6, %7 : vector<128x128xf32>
    %9 = arith.addf %3, %8 : vector<128x128xf32>
    %c0_7 = arith.constant 0 : index
    %c0_8 = arith.constant 0 : index
    %10 = vector.load %arg5[%c0_7, %c0_8] : memref<1x128xf32, #tpu.memory_space<vmem>>, vector<1x128xf32>
    %11 = vector.broadcast %10 : vector<1x128xf32> to vector<128x128xf32>
    %12 = arith.addf %9, %11 : vector<128x128xf32>
    %cst_9 = arith.constant 0.000000e+00 : f32
    %13 = vector.broadcast %cst_9 : f32 to vector<128x128xf32>
    %14 = arith.maximumf %12, %13 : vector<128x128xf32>
    %15 = arith.truncf %14 : vector<128x128xf32> to vector<128x128xbf16>
    %c0_10 = arith.constant 0 : index
    %c0_11 = arith.constant 0 : index
    %16 = vector.load %arg6[%c0_10, %c0_11] : memref<128x128xbf16, #tpu.memory_space<vmem>>, vector<128x128xbf16>
    %cst_12 = arith.constant dense<0.000000e+00> : vector<128x128xf32>
    %17 = tpu.matmul %15, %16, %cst_12 {dimension_numbers = #tpu.dot_dimension_numbers<[1], [0], [0], [1], [0, 0, 1, 1], [], []>} : vector<128x128xbf16>, vector<128x128xbf16>, vector<128x128xf32> -> vector<128x128xf32>
    %c0_13 = arith.constant 0 : index
    %c0_14 = arith.constant 0 : index
    %18 = vector.load %arg7[%c0_13, %c0_14] : memref<1x128xf32, #tpu.memory_space<vmem>>, vector<1x128xf32>
    %19 = vector.broadcast %18 : vector<1x128xf32> to vector<128x128xf32>
    %20 = arith.addf %17, %19 : vector<128x128xf32>
    %cst_15 = arith.constant 0.000000e+00 : f32
    %21 = vector.broadcast %cst_15 : f32 to vector<128x128xf32>
    %22 = arith.maximumf %20, %21 : vector<128x128xf32>
    %23 = arith.truncf %22 : vector<128x128xf32> to vector<128x128xbf16>
    %c0_16 = arith.constant 0 : index
    %c0_17 = arith.constant 0 : index
    %24 = vector.load %arg8[%c0_16, %c0_17] : memref<128x128xbf16, #tpu.memory_space<vmem>>, vector<128x128xbf16>
    %cst_18 = arith.constant dense<0.000000e+00> : vector<128x128xf32>
    %25 = tpu.matmul %23, %24, %cst_18 {dimension_numbers = #tpu.dot_dimension_numbers<[1], [0], [0], [1], [0, 0, 1, 1], [], []>} : vector<128x128xbf16>, vector<128x128xbf16>, vector<128x128xf32> -> vector<128x128xf32>
    %c0_19 = arith.constant 0 : index
    %c0_20 = arith.constant 0 : index
    %26 = vector.load %arg9[%c0_19, %c0_20] : memref<1x128xf32, #tpu.memory_space<vmem>>, vector<1x128xf32>
    %27 = vector.broadcast %26 : vector<1x128xf32> to vector<128x128xf32>
    %28 = arith.addf %25, %27 : vector<128x128xf32>
    %c0_21 = arith.constant 0 : index
    %c0_22 = arith.constant 0 : index
    %29 = vector.load %arg10[%c0_21, %c0_22] : memref<128x128xf32, #tpu.memory_space<vmem>>, vector<128x128xf32>
    tpu.vector_store %arg10[%c0_21, %c0_22], %28 {strides = array<i32>} : memref<128x128xf32, #tpu.memory_space<vmem>>, vector<128x128xf32>,
    return
  }
  func.func @transform_0(%arg0: i32) -> (i32, i32) {
    %c0_i32 = arith.constant 0 : i32
    %c0_i32_0 = arith.constant 0 : i32
    return %arg0, %c0_i32 : i32, i32
  }
  func.func @transform_1(%arg0: i32) -> (i32, i32) {
    %c0_i32 = arith.constant 0 : i32
    %c0_i32_0 = arith.constant 0 : i32
    return %arg0, %c0_i32 : i32, i32
  }
  func.func @transform_2(%arg0: i32) -> (i32, i32) {
    %c0_i32 = arith.constant 0 : i32
    %c0_i32_0 = arith.constant 0 : i32
    %c0_i32_1 = arith.constant 0 : i32
    return %c0_i32, %c0_i32_0 : i32, i32
  }
  func.func @transform_3(%arg0: i32) -> (i32, i32) {
    %c0_i32 = arith.constant 0 : i32
    %c0_i32_0 = arith.constant 0 : i32
    %c0_i32_1 = arith.constant 0 : i32
    return %c0_i32, %c0_i32_0 : i32, i32
  }
  func.func @transform_4(%arg0: i32) -> (i32, i32) {
    %c0_i32 = arith.constant 0 : i32
    %c0_i32_0 = arith.constant 0 : i32
    %c0_i32_1 = arith.constant 0 : i32
    return %c0_i32, %c0_i32_0 : i32, i32
  }
  func.func @transform_5(%arg0: i32) -> (i32, i32) {
    %c0_i32 = arith.constant 0 : i32
    %c0_i32_0 = arith.constant 0 : i32
    %c0_i32_1 = arith.constant 0 : i32
    return %c0_i32, %c0_i32_0 : i32, i32
  }
  func.func @transform_6(%arg0: i32) -> (i32, i32) {
    %c0_i32 = arith.constant 0 : i32
    %c0_i32_0 = arith.constant 0 : i32
    %c0_i32_1 = arith.constant 0 : i32
    return %c0_i32, %c0_i32_0 : i32, i32
  }
  func.func @transform_7(%arg0: i32) -> (i32, i32) {
    %c0_i32 = arith.constant 0 : i32
    %c0_i32_0 = arith.constant 0 : i32
    %c0_i32_1 = arith.constant 0 : i32
    return %c0_i32, %c0_i32_0 : i32, i32
  }
  func.func @transform_8(%arg0: i32) -> (i32, i32) {
    %c0_i32 = arith.constant 0 : i32
    %c0_i32_0 = arith.constant 0 : i32
    %c0_i32_1 = arith.constant 0 : i32
    return %c0_i32, %c0_i32_0 : i32, i32
  }
  func.func @transform_9(%arg0: i32) -> (i32, i32) {
    %c0_i32 = arith.constant 0 : i32
    %c0_i32_0 = arith.constant 0 : i32
    return %arg0, %c0_i32 : i32, i32
  }
}

</mosaic_0001>

<llo_original>
// kernel: tpu_custom_call.1
$region0: #{tpu_custom_call.1}
  #allocation0 [shape = 'u32[]', space=smem, size = 0x4, offset = 0x4, fixed_abs, tag = 'smem constant byte address 0x4 - core index']
  #allocation1 [shape = 'u32[72,128]{1,0:T(1,128)}', space=vmem, size = 0x9000, scoped, tag = 'internal scratch']
  %s0 = inlined_call_operand.vmem [shape: f32[384,7], index: 0, kind: input, shape index: {}]
  %s1 = inlined_call_operand.vmem [shape: f32[384,1], index: 1, kind: input, shape index: {}]
  %s2 = inlined_call_operand.vmem [shape: bf16[7,128], index: 2, kind: input, shape index: {}]
  %s3 = inlined_call_operand.vmem [shape: f32[1,128], index: 3, kind: input, shape index: {}]
  %s4 = inlined_call_operand.vmem [shape: f32[1,128], index: 4, kind: input, shape index: {}]
  %s5 = inlined_call_operand.vmem [shape: bf16[128,128], index: 5, kind: input, shape index: {}]
  %s6 = inlined_call_operand.vmem [shape: f32[1,128], index: 6, kind: input, shape index: {}]
  %s7 = inlined_call_operand.vmem [shape: bf16[128,128], index: 7, kind: input, shape index: {}]
  %s8 = inlined_call_operand.vmem [shape: f32[1,128], index: 8, kind: input, shape index: {}]
  %s9 = inlined_call_operand.hbm [shape: f32[384,128], index: 9, kind: output, shape index: {}]
  %s10 = sld [smem:[#allocation0]]
  $region69: #{tpu_custom_call.1} parent=0
    _
  %s12 = ssub.s32 1, %s10
  %s13 = scalar_select 0, %s12, %s10
  $region1: #{tpu_custom_call.1} parent=0
    #allocation2 [shape = 'u8[131072]{0}', space=vmem, size = 0x20000, scoped, tag = 'output window, operand 0']
    #allocation3 [shape = 's32[2]{0}', space=sflag, size = 0x8, scoped, tag = 'scoped memory for tpu_custom_call.1']
    %14 = vsyncpa [#allocation3], 0
    %s15 = scalar_lea.sflag [#allocation3], 1
    %16 = vsyncpa %s15, 0
    loop: start=0, step=1, limit=5
    $region2: #{tpu_custom_call.1} parent=1 // loop_pre_header
      _
    $region3: #{tpu_custom_call.1} parent=1 // loop_header
      %s18 = sphi 0, %s22
      %p19 = scmp.ge.s32.totalorder %s18, 5
      %s28 = sphi 0, %s30
      %s31 = sphi 0, %s28
      %s32 = sphi 0, %s31
      %s48 = sphi 0, %s32
      %s54 = sphi 0, %s56
      %s57 = sphi 0, %s54
      %s58 = sphi 0, %s57
      %s74 = sphi 0, %s58
      %s78 = sphi 0, %s78
      %s80 = sphi 0, %s78
      %s81 = sphi 0, %s80
      %s95 = sphi 0, %s81
      %s99 = sphi 0, %s99
      %s101 = sphi 0, %s99
      %s102 = sphi 0, %s101
      %s116 = sphi 0, %s102
      %s120 = sphi 0, %s120
      %s122 = sphi 0, %s120
      %s123 = sphi 0, %s122
      %s137 = sphi 0, %s123
      %s141 = sphi 0, %s141
      %s143 = sphi 0, %s141
      %s144 = sphi 0, %s143
      %s158 = sphi 0, %s144
      %s162 = sphi 0, %s162
      %s164 = sphi 0, %s162
      %s165 = sphi 0, %s164
      %s179 = sphi 0, %s165
      %s183 = sphi 0, %s183
      %s185 = sphi 0, %s183
      %s186 = sphi 0, %s185
      %s200 = sphi 0, %s186
      %s204 = sphi 0, %s204
      %s206 = sphi 0, %s204
      %s207 = sphi 0, %s206
      %s221 = sphi 0, %s207
      %s227 = sphi 0, %s229
      %s230 = sphi 0, %s227
      %s231 = sphi 0, %s230
      %s247 = sphi 0, %s231
    $region4: #{tpu_custom_call.1} parent=1 // loop_header_branch
      %21 = sbr.rel (%p19) target = $region8
    $region5: #{tpu_custom_call.1} parent=1 // loop_body
      %s23 = ssub.s32 %s18, 1
      %s24 = ssub.s32 %s18, 2
      %s25 = sadd.s32 %s18, 1
      %s26 = ssub.s32 %s18, %s25
      %p27 = scmp.eq.s32.totalorder %s26, 0
      %s29 = sadd.s32 %s28, 1
      %s30 = scalar_select %p27, %s28, %s29
      %p33 = pneg %p27
      %p34 = scmp.eq.s32.totalorder %s18, 2
      %p35 = por %p33, %p34
      %p36 = scmp.ne.s32.totalorder %s28, %s31
      %p37 = scmp.eq.s32.totalorder %s18, 0
      %p38 = por %p36, %p37
      %p39 = scmp.ne.s32.totalorder %s28, %s31
      %p40 = scmp.eq.s32.totalorder %s23, 2
      %p41 = por %p39, %p40
      %p42 = scmp.ne.s32.totalorder %s31, %s32
      %p43 = scmp.eq.s32.totalorder %s23, 0
      %p44 = por %p42, %p43
      %p45 = scmp.ne.s32.totalorder %s31, %s32
      %p46 = scmp.eq.s32.totalorder %s24, 2
      %p47 = por %p45, %p46
      %p49 = scmp.ne.s32.totalorder %s32, %s48
      %p50 = scmp.eq.s32.totalorder %s24, 0
      %p51 = por %p49, %p50
      %s52 = ssub.s32 %s18, %s25
      %p53 = scmp.eq.s32.totalorder %s52, 0
      %s55 = sadd.s32 %s54, 1
      %s56 = scalar_select %p53, %s54, %s55
      %p59 = pneg %p53
      %p60 = scmp.eq.s32.totalorder %s18, 2
      %p61 = por %p59, %p60
      %p62 = scmp.ne.s32.totalorder %s54, %s57
      %p63 = scmp.eq.s32.totalorder %s18, 0
      %p64 = por %p62, %p63
      %p65 = scmp.ne.s32.totalorder %s54, %s57
      %p66 = scmp.eq.s32.totalorder %s23, 2
      %p67 = por %p65, %p66
      %p68 = scmp.ne.s32.totalorder %s57, %s58
      %p69 = scmp.eq.s32.totalorder %s23, 0
      %p70 = por %p68, %p69
      %p71 = scmp.ne.s32.totalorder %s57, %s58
      %p72 = scmp.eq.s32.totalorder %s24, 2
      %p73 = por %p71, %p72
      %p75 = scmp.ne.s32.totalorder %s58, %s74
      %p76 = scmp.eq.s32.totalorder %s24, 0
      %p77 = por %p75, %p76
      %s79 = sadd.s32 %s78, 1
      %p82 = scmp.eq.s32.totalorder %s18, 2
      %p83 = scmp.ne.s32.totalorder %s78, %s80
      %p84 = scmp.eq.s32.totalorder %s18, 0
      %p85 = por %p83, %p84
      %p86 = scmp.ne.s32.totalorder %s78, %s80
      %p87 = scmp.eq.s32.totalorder %s23, 2
      %p88 = por %p86, %p87
      %p89 = scmp.ne.s32.totalorder %s80, %s81
      %p90 = scmp.eq.s32.totalorder %s23, 0
      %p91 = por %p89, %p90
      %p92 = scmp.ne.s32.totalorder %s80, %s81
      %p93 = scmp.eq.s32.totalorder %s24, 2
      %p94 = por %p92, %p93
      %p96 = scmp.ne.s32.totalorder %s81, %s95
      %p97 = scmp.eq.s32.totalorder %s24, 0
      %p98 = por %p96, %p97
      %s100 = sadd.s32 %s99, 1
      %p103 = scmp.eq.s32.totalorder %s18, 2
      %p104 = scmp.ne.s32.totalorder %s99, %s101
      %p105 = scmp.eq.s32.totalorder %s18, 0
      %p106 = por %p104, %p105
      %p107 = scmp.ne.s32.totalorder %s99, %s101
      %p108 = scmp.eq.s32.totalorder %s23, 2
      %p109 = por %p107, %p108
      %p110 = scmp.ne.s32.totalorder %s101, %s102
      %p111 = scmp.eq.s32.totalorder %s23, 0
      %p112 = por %p110, %p111
      %p113 = scmp.ne.s32.totalorder %s101, %s102
      %p114 = scmp.eq.s32.totalorder %s24, 2
      %p115 = por %p113, %p114
      %p117 = scmp.ne.s32.totalorder %s102, %s116
      %p118 = scmp.eq.s32.totalorder %s24, 0
      %p119 = por %p117, %p118
      %s121 = sadd.s32 %s120, 1
      %p124 = scmp.eq.s32.totalorder %s18, 2
      %p125 = scmp.ne.s32.totalorder %s120, %s122
      %p126 = scmp.eq.s32.totalorder %s18, 0
      %p127 = por %p125, %p126
      %p128 = scmp.ne.s32.totalorder %s120, %s122
      %p129 = scmp.eq.s32.totalorder %s23, 2
      %p130 = por %p128, %p129
      %p131 = scmp.ne.s32.totalorder %s122, %s123
      %p132 = scmp.eq.s32.totalorder %s23, 0
      %p133 = por %p131, %p132
      %p134 = scmp.ne.s32.totalorder %s122, %s123
      %p135 = scmp.eq.s32.totalorder %s24, 2
      %p136 = por %p134, %p135
      %p138 = scmp.ne.s32.totalorder %s123, %s137
      %p139 = scmp.eq.s32.totalorder %s24, 0
      %p140 = por %p138, %p139
      %s142 = sadd.s32 %s141, 1
      %p145 = scmp.eq.s32.totalorder %s18, 2
      %p146 = scmp.ne.s32.totalorder %s141, %s143
      %p147 = scmp.eq.s32.totalorder %s18, 0
      %p148 = por %p146, %p147
      %p149 = scmp.ne.s32.totalorder %s141, %s143
      %p150 = scmp.eq.s32.totalorder %s23, 2
      %p151 = por %p149, %p150
      %p152 = scmp.ne.s32.totalorder %s143, %s144
      %p153 = scmp.eq.s32.totalorder %s23, 0
      %p154 = por %p152, %p153
      %p155 = scmp.ne.s32.totalorder %s143, %s144
      %p156 = scmp.eq.s32.totalorder %s24, 2
      %p157 = por %p155, %p156
      %p159 = scmp.ne.s32.totalorder %s144, %s158
      %p160 = scmp.eq.s32.totalorder %s24, 0
      %p161 = por %p159, %p160
      %s163 = sadd.s32 %s162, 1
      %p166 = scmp.eq.s32.totalorder %s18, 2
      %p167 = scmp.ne.s32.totalorder %s162, %s164
      %p168 = scmp.eq.s32.totalorder %s18, 0
      %p169 = por %p167, %p168
      %p170 = scmp.ne.s32.totalorder %s162, %s164
      %p171 = scmp.eq.s32.totalorder %s23, 2
      %p172 = por %p170, %p171
      %p173 = scmp.ne.s32.totalorder %s164, %s165
      %p174 = scmp.eq.s32.totalorder %s23, 0
      %p175 = por %p173, %p174
      %p176 = scmp.ne.s32.totalorder %s164, %s165
      %p177 = scmp.eq.s32.totalorder %s24, 2
      %p178 = por %p176, %p177
      %p180 = scmp.ne.s32.totalorder %s165, %s179
      %p181 = scmp.eq.s32.totalorder %s24, 0
      %p182 = por %p180, %p181
      %s184 = sadd.s32 %s183, 1
      %p187 = scmp.eq.s32.totalorder %s18, 2
      %p188 = scmp.ne.s32.totalorder %s183, %s185
      %p189 = scmp.eq.s32.totalorder %s18, 0
      %p190 = por %p188, %p189
      %p191 = scmp.ne.s32.totalorder %s183, %s185
      %p192 = scmp.eq.s32.totalorder %s23, 2
      %p193 = por %p191, %p192
      %p194 = scmp.ne.s32.totalorder %s185, %s186
      %p195 = scmp.eq.s32.totalorder %s23, 0
      %p196 = por %p194, %p195
      %p197 = scmp.ne.s32.totalorder %s185, %s186
      %p198 = scmp.eq.s32.totalorder %s24, 2
      %p199 = por %p197, %p198
      %p201 = scmp.ne.s32.totalorder %s186, %s200
      %p202 = scmp.eq.s32.totalorder %s24, 0
      %p203 = por %p201, %p202
      %s205 = sadd.s32 %s204, 1
      %p208 = scmp.eq.s32.totalorder %s18, 2
      %p209 = scmp.ne.s32.totalorder %s204, %s206
      %p210 = scmp.eq.s32.totalorder %s18, 0
      %p211 = por %p209, %p210
      %p212 = scmp.ne.s32.totalorder %s204, %s206
      %p213 = scmp.eq.s32.totalorder %s23, 2
      %p214 = por %p212, %p213
      %p215 = scmp.ne.s32.totalorder %s206, %s207
      %p216 = scmp.eq.s32.totalorder %s23, 0
      %p217 = por %p215, %p216
      %p218 = scmp.ne.s32.totalorder %s206, %s207
      %p219 = scmp.eq.s32.totalorder %s24, 2
      %p220 = por %p218, %p219
      %p222 = scmp.ne.s32.totalorder %s207, %s221
      %p223 = scmp.eq.s32.totalorder %s24, 0
      %p224 = por %p222, %p223
      %s225 = ssub.s32 %s18, %s25
      %p226 = scmp.eq.s32.totalorder %s225, 0
      %s228 = sadd.s32 %s227, 1
      %s229 = scalar_select %p226, %s227, %s228
      %p232 = pneg %p226
      %p233 = scmp.eq.s32.totalorder %s18, 2
      %p234 = por %p232, %p233
      %p235 = scmp.ne.s32.totalorder %s227, %s230
      %p236 = scmp.eq.s32.totalorder %s18, 0
      %p237 = por %p235, %p236
      %p238 = scmp.ne.s32.totalorder %s227, %s230
      %p239 = scmp.eq.s32.totalorder %s23, 2
      %p240 = por %p238, %p239
      %p241 = scmp.ne.s32.totalorder %s230, %s231
      %p242 = scmp.eq.s32.totalorder %s23, 0
      %p243 = por %p241, %p242
      %p244 = scmp.ne.s32.totalorder %s230, %s231
      %p245 = scmp.eq.s32.totalorder %s24, 2
      %p246 = por %p244, %p245
      %p248 = scmp.ne.s32.totalorder %s231, %s247
      %p249 = scmp.eq.s32.totalorder %s24, 0
      %p250 = por %p248, %p249
      %p251 = scmp.le.s32.totalorder 1, %s18
      %p252 = scmp.lt.s32.totalorder %s18, 4
      %p253 = pnand %p251, %p252
      %p254 = pneg %p253
      // Predicated region
      $region9: #{tpu_custom_call.1} parent=5 // pred_check
        _
      $region10: #{tpu_custom_call.1} parent=5 // pred_check_branch
        %256 = sbr.rel (%p253) target = $region12
      $region11: #{tpu_custom_call.1} parent=5 // pred_region
        %s257 = ssub.s32 %s18, 1
        // Predicated region
        $region13: #{tpu_custom_call.1} parent=11 // pred_check
          %p258 = pneg %p91
        $region14: #{tpu_custom_call.1} parent=11 // pred_check_branch
          %260 = sbr.rel (%p258) target = $region16
        $region15: #{tpu_custom_call.1} parent=11 // pred_region
          _
        $region16: #{tpu_custom_call.1} parent=11 // pred_fallthru
          _
        // Predicated region
        $region17: #{tpu_custom_call.1} parent=11 // pred_check
          %p261 = pneg %p112
        $region18: #{tpu_custom_call.1} parent=11 // pred_check_branch
          %263 = sbr.rel (%p261) target = $region20
        $region19: #{tpu_custom_call.1} parent=11 // pred_region
          _
        $region20: #{tpu_custom_call.1} parent=11 // pred_fallthru
          _
        // Predicated region
        $region21: #{tpu_custom_call.1} parent=11 // pred_check
          %p264 = pneg %p133
        $region22: #{tpu_custom_call.1} parent=11 // pred_check_branch
          %266 = sbr.rel (%p264) target = $region24
        $region23: #{tpu_custom_call.1} parent=11 // pred_region
          _
        $region24: #{tpu_custom_call.1} parent=11 // pred_fallthru
          _
        // Predicated region
        $region25: #{tpu_custom_call.1} parent=11 // pred_check
          %p267 = pneg %p154
        $region26: #{tpu_custom_call.1} parent=11 // pred_check_branch
          %269 = sbr.rel (%p267) target = $region28
        $region27: #{tpu_custom_call.1} parent=11 // pred_region
          _
        $region28: #{tpu_custom_call.1} parent=11 // pred_fallthru
          _
        // Predicated region
        $region29: #{tpu_custom_call.1} parent=11 // pred_check
          %p270 = pneg %p175
        $region30: #{tpu_custom_call.1} parent=11 // pred_check_branch
          %272 = sbr.rel (%p270) target = $region32
        $region31: #{tpu_custom_call.1} parent=11 // pred_region
          _
        $region32: #{tpu_custom_call.1} parent=11 // pred_fallthru
          _
        // Predicated region
        $region33: #{tpu_custom_call.1} parent=11 // pred_check
          %p273 = pneg %p196
        $region34: #{tpu_custom_call.1} parent=11 // pred_check_branch
          %275 = sbr.rel (%p273) target = $region36
        $region35: #{tpu_custom_call.1} parent=11 // pred_region
          _
        $region36: #{tpu_custom_call.1} parent=11 // pred_fallthru
          _
        // Predicated region
        $region37: #{tpu_custom_call.1} parent=11 // pred_check
          %p276 = pneg %p217
        $region38: #{tpu_custom_call.1} parent=11 // pred_check_branch
          %278 = sbr.rel (%p276) target = $region40
        $region39: #{tpu_custom_call.1} parent=11 // pred_region
          _
        $region40: #{tpu_custom_call.1} parent=11 // pred_fallthru
          _
      $region12: #{tpu_custom_call.1} parent=5 // pred_fallthru
        _
      %p279 = scmp.lt.s32.totalorder %s18, 3
      // Predicated region
      $region41: #{tpu_custom_call.1} parent=5 // pred_check
        %p280 = pneg %p279
      $region42: #{tpu_custom_call.1} parent=5 // pred_check_branch
        %282 = sbr.rel (%p280) target = $region44
      $region43: #{tpu_custom_call.1} parent=5 // pred_region
        // Predicated region
        $region45: #{tpu_custom_call.1} parent=43 // pred_check
          %p283 = pneg %p38
        $region46: #{tpu_custom_call.1} parent=43 // pred_check_branch
          %285 = sbr.rel (%p283) target = $region48
        $region47: #{tpu_custom_call.1} parent=43 // pred_region
          %s286 = smul.u32 16, %s18
          %p287 = scmp.lt.s32.totalorder %s286, 47
          %s288 = scalar_select %p287, %s286, 47
          %s289 = smul.addr %s288, 8
          %s290 = scalar_lea.vmem %s0, %s289
          %s291 = smul.u32 16, %s18
        $region48: #{tpu_custom_call.1} parent=43 // pred_fallthru
          _
        // Predicated region
        $region49: #{tpu_custom_call.1} parent=43 // pred_check
          %p292 = pneg %p64
        $region50: #{tpu_custom_call.1} parent=43 // pred_check_branch
          %294 = sbr.rel (%p292) target = $region52
        $region51: #{tpu_custom_call.1} parent=43 // pred_region
          %s295 = smul.u32 16, %s18
          %p296 = scmp.lt.s32.totalorder %s295, 47
          %s297 = scalar_select %p296, %s295, 47
          %s298 = smul.addr %s297, 8
          %s299 = scalar_lea.vmem %s1, %s298
          %s300 = smul.u32 16, %s18
        $region52: #{tpu_custom_call.1} parent=43 // pred_fallthru
          _
      $region44: #{tpu_custom_call.1} parent=5 // pred_fallthru
        _
      %p301 = scmp.le.s32.totalorder 1, %s18
      %p302 = scmp.lt.s32.totalorder %s18, 4
      %p303 = pnand %p301, %p302
      %p304 = pneg %p303
      // Predicated region
      $region53: #{tpu_custom_call.1} parent=5 // pred_check
        _
      $region54: #{tpu_custom_call.1} parent=5 // pred_check_branch
        %306 = sbr.rel (%p303) target = $region56
      $region55: #{tpu_custom_call.1} parent=5 // pred_region
        %s307 = ssub.s32 %s18, 1
        %s308 = smul.u32 16, %s23
        %p309 = scmp.lt.s32.totalorder %s308, 47
        %s310 = scalar_select %p309, %s308, 47
        %s311 = smul.addr %s310, 8
        %s312 = scalar_lea.vmem %s0, %s311
        %p313 = pneg %p44
        %p314 = pneg %p41
        %s315 = smul.u32 16, %s23
        %p316 = scmp.lt.s32.totalorder %s315, 47
        %s317 = scalar_select %p316, %s315, 47
        %s318 = smul.addr %s317, 8
        %s319 = scalar_lea.vmem %s1, %s318
        %p320 = pneg %p70
        %p321 = pneg %p67
        %p322 = pneg %p91
        %p323 = pneg %p88
        %p324 = pneg %p112
        %p325 = pneg %p109
        %p326 = pneg %p133
        %p327 = pneg %p130
        %p328 = pneg %p154
        %p329 = pneg %p151
        %p330 = pneg %p175
        %p331 = pneg %p172
        %p332 = pneg %p196
        %p333 = pneg %p193
        %p334 = pneg %p217
        %p335 = pneg %p214
        %p336 = pneg %p243
        %p337 = pneg %p240
        %s338 = sand.u32 %s230, 1
        %s339 = scalar_lea.sflag [#allocation3], %s338
        %s340 = sand.u32 %s230, 1
        %s341 = smul.addr %s340, 128
        %s342 = scalar_lea.vmem [#allocation2], %s341
        %s343 = smul.u32 16, %s23
        %p344 = scmp.lt.s32.totalorder %s343, 47
        %s345 = scalar_select %p344, %s343, 47
        %s346 = smul.addr %s345, 8
        %s347 = scalar_lea.vmem %s0, %s346
        %s348 = smul.u32 16, %s23
        %s349 = smul.u32 16, %s23
        %p350 = scmp.lt.s32.totalorder %s349, 47
        %s351 = scalar_select %p350, %s349, 47
        %s352 = smul.addr %s351, 8
        %s353 = scalar_lea.vmem %s1, %s352
        %s354 = smul.u32 16, %s23
        %s355 = smul.u32 16, %s23
        %v357 = vld [vmem:[%s347] sm:$0xff]
        %v358 = vld [vmem:[%s347 + $0x8] sm:$0xff]
        %v359 = vld [vmem:[%s347 + $0x10] sm:$0xff]
        %v360 = vld [vmem:[%s347 + $0x18] sm:$0xff]
        %v361 = vld [vmem:[%s347 + $0x20] sm:$0xff]
        %v362 = vld [vmem:[%s347 + $0x28] sm:$0xff]
        %v363 = vld [vmem:[%s347 + $0x30] sm:$0xff]
        %v364 = vld [vmem:[%s347 + $0x38] sm:$0xff]
        %v365 = vld [vmem:[%s347 + $0x40] sm:$0xff]
        %v366 = vld [vmem:[%s347 + $0x48] sm:$0xff]
        %v367 = vld [vmem:[%s347 + $0x50] sm:$0xff]
        %v368 = vld [vmem:[%s347 + $0x58] sm:$0xff]
        %v369 = vld [vmem:[%s347 + $0x60] sm:$0xff]
        %v370 = vld [vmem:[%s347 + $0x68] sm:$0xff]
        %v371 = vld [vmem:[%s347 + $0x70] sm:$0xff]
        %v372 = vld [vmem:[%s347 + $0x78] sm:$0xff]
        %v373 = vpack.c.bf16 %v358, %v357
        %v374 = vpack.c.bf16 %v360, %v359
        %v375 = vpack.c.bf16 %v362, %v361
        %v376 = vpack.c.bf16 %v364, %v363
        %v377 = vpack.c.bf16 %v366, %v365
        %v378 = vpack.c.bf16 %v368, %v367
        %v379 = vpack.c.bf16 %v370, %v369
        %v380 = vpack.c.bf16 %v372, %v371
        %v381 = vld [vmem:[%s2] sm:$0xf]
        %v382 = vld [vmem:[%s353] sm:$0xff]
        %v383 = vld [vmem:[%s353 + $0x8] sm:$0xff]
        %v384 = vld [vmem:[%s353 + $0x10] sm:$0xff]
        %v385 = vld [vmem:[%s353 + $0x18] sm:$0xff]
        %v386 = vld [vmem:[%s353 + $0x20] sm:$0xff]
        %v387 = vld [vmem:[%s353 + $0x28] sm:$0xff]
        %v388 = vld [vmem:[%s353 + $0x30] sm:$0xff]
        %v389 = vld [vmem:[%s353 + $0x38] sm:$0xff]
        %v390 = vld [vmem:[%s353 + $0x40] sm:$0xff]
        %v391 = vld [vmem:[%s353 + $0x48] sm:$0xff]
        %v392 = vld [vmem:[%s353 + $0x50] sm:$0xff]
        %v393 = vld [vmem:[%s353 + $0x58] sm:$0xff]
        %v394 = vld [vmem:[%s353 + $0x60] sm:$0xff]
        %v395 = vld [vmem:[%s353 + $0x68] sm:$0xff]
        %v396 = vld [vmem:[%s353 + $0x70] sm:$0xff]
        %v397 = vld [vmem:[%s353 + $0x78] sm:$0xff]
        %v398 = vld [vmem:[%s3] sm:$0x1]
        %400 = vset.pattern.permute.xlu0 0
        %401 = vperm.xlu0 %400, %v382
        %v402 = vpop.permute.xlu0 %401
        %405 = vset.pattern.permute.xlu0 0
        %406 = vperm.xlu0 %405, %v383
        %v407 = vpop.permute.xlu0 %406
        %410 = vset.pattern.permute.xlu0 0
        %411 = vperm.xlu0 %410, %v384
        %v412 = vpop.permute.xlu0 %411
        %415 = vset.pattern.permute.xlu0 0
        %416 = vperm.xlu0 %415, %v385
        %v417 = vpop.permute.xlu0 %416
        %420 = vset.pattern.permute.xlu0 0
        %421 = vperm.xlu0 %420, %v386
        %v422 = vpop.permute.xlu0 %421
        %425 = vset.pattern.permute.xlu0 0
        %426 = vperm.xlu0 %425, %v387
        %v427 = vpop.permute.xlu0 %426
        %430 = vset.pattern.permute.xlu0 0
        %431 = vperm.xlu0 %430, %v388
        %v432 = vpop.permute.xlu0 %431
        %435 = vset.pattern.permute.xlu0 0
        %436 = vperm.xlu0 %435, %v389
        %v437 = vpop.permute.xlu0 %436
        %440 = vset.pattern.permute.xlu0 0
        %441 = vperm.xlu0 %440, %v390
        %v442 = vpop.permute.xlu0 %441
        %445 = vset.pattern.permute.xlu0 0
        %446 = vperm.xlu0 %445, %v391
        %v447 = vpop.permute.xlu0 %446
        %450 = vset.pattern.permute.xlu0 0
        %451 = vperm.xlu0 %450, %v392
        %v452 = vpop.permute.xlu0 %451
        %455 = vset.pattern.permute.xlu0 0
        %456 = vperm.xlu0 %455, %v393
        %v457 = vpop.permute.xlu0 %456
        %460 = vset.pattern.permute.xlu0 0
        %461 = vperm.xlu0 %460, %v394
        %v462 = vpop.permute.xlu0 %461
        %465 = vset.pattern.permute.xlu0 0
        %466 = vperm.xlu0 %465, %v395
        %v467 = vpop.permute.xlu0 %466
        %470 = vset.pattern.permute.xlu0 0
        %471 = vperm.xlu0 %470, %v396
        %v472 = vpop.permute.xlu0 %471
        %475 = vset.pattern.permute.xlu0 0
        %476 = vperm.xlu0 %475, %v397
        %v477 = vpop.permute.xlu0 %476
        %v480 = vperm.slane %v398, 0
        %v482 = vmul.f32 %v402, %v480
        %v483 = vmul.f32 %v407, %v480
        %v484 = vmul.f32 %v412, %v480
        %v485 = vmul.f32 %v417, %v480
        %v486 = vmul.f32 %v422, %v480
        %v487 = vmul.f32 %v427, %v480
        %v488 = vmul.f32 %v432, %v480
        %v489 = vmul.f32 %v437, %v480
        %v490 = vmul.f32 %v442, %v480
        %v491 = vmul.f32 %v447, %v480
        %v492 = vmul.f32 %v452, %v480
        %v493 = vmul.f32 %v457, %v480
        %v494 = vmul.f32 %v462, %v480
        %v495 = vmul.f32 %v467, %v480
        %v496 = vmul.f32 %v472, %v480
        %v497 = vmul.f32 %v477, %v480
        %vm498 = vcmask 56320
        %v500 = vsel %vm498, %v373, 0
        %v503 = vsel %vm498, %v374, 0
        %v506 = vsel %vm498, %v375, 0
        %v509 = vsel %vm498, %v376, 0
        %v512 = vsel %vm498, %v377, 0
        %v515 = vsel %vm498, %v378, 0
        %v518 = vsel %vm498, %v379, 0
        %v521 = vsel %vm498, %v380, 0
        %vm523 = vcmask 1042432
        %vm524 = vcmask 1043456
        %v525 = vsel %vm523, 4294967295, 65535
        %v526 = vsel %vm524, %v525, 0
        %v528 = vand.u32 %v381, %v526
        %530 = vmatpush.bf16.msra.mxu0 0
        %531 = vmatpush.bf16.msra.mxu0 0
        %532 = vmatpush.bf16.msra.mxu0 0
        %533 = vmatpush.bf16.msra.mxu0 0
        %534 = vmatpush.bf16.msra.mxu0 0
        %535 = vmatpush.bf16.msra.mxu0 0
        %536 = vmatpush.bf16.msra.mxu0 0
        %537 = vmatpush.bf16.msra.mxu0 %v528
        %538 = vmatmul.bf16.gmra.mxu0 %v500
        %v539 = vpop.f32.mrf.mxu0
        %v540 = vadd.f32 %v482, %v539
        %v541 = vpop.f32.mrf.mxu0
        %v542 = vadd.f32 %v483, %v541
        %543 = vmatmul.bf16.gmra.mxu0 %v503
        %v544 = vpop.f32.mrf.mxu0
        %v545 = vadd.f32 %v484, %v544
        %v546 = vpop.f32.mrf.mxu0
        %v547 = vadd.f32 %v485, %v546
        %548 = vmatmul.bf16.gmra.mxu0 %v506
        %v549 = vpop.f32.mrf.mxu0
        %v550 = vadd.f32 %v486, %v549
        %v551 = vpop.f32.mrf.mxu0
        %v552 = vadd.f32 %v487, %v551
        %553 = vmatmul.bf16.gmra.mxu0 %v509
        %v554 = vpop.f32.mrf.mxu0
        %v555 = vadd.f32 %v488, %v554
        %v556 = vpop.f32.mrf.mxu0
        %v557 = vadd.f32 %v489, %v556
        %558 = vmatmul.bf16.gmra.mxu0 %v512
        %v559 = vpop.f32.mrf.mxu0
        %v560 = vadd.f32 %v490, %v559
        %v561 = vpop.f32.mrf.mxu0
        %v562 = vadd.f32 %v491, %v561
        %563 = vmatmul.bf16.gmra.mxu0 %v515
        %v564 = vpop.f32.mrf.mxu0
        %v565 = vadd.f32 %v492, %v564
        %v566 = vpop.f32.mrf.mxu0
        %v567 = vadd.f32 %v493, %v566
        %568 = vmatmul.bf16.gmra.mxu0 %v518
        %v569 = vpop.f32.mrf.mxu0
        %v570 = vadd.f32 %v494, %v569
        %v571 = vpop.f32.mrf.mxu0
        %v572 = vadd.f32 %v495, %v571
        %573 = vmatmul.bf16.gmra.mxu0 %v521
        %v574 = vpop.f32.mrf.mxu0
        %v575 = vadd.f32 %v496, %v574
        %v576 = vpop.f32.mrf.mxu0
        %v577 = vadd.f32 %v497, %v576
        %578 = vdwg.mxu0
        %v579 = vld [vmem:[%s4] sm:$0x1]
        %v581 = vperm.slane %v579, 0
        %v583 = vadd.f32 %v540, %v581
        %v584 = vadd.f32 %v542, %v581
        %v585 = vadd.f32 %v545, %v581
        %v586 = vadd.f32 %v547, %v581
        %v587 = vadd.f32 %v550, %v581
        %v588 = vadd.f32 %v552, %v581
        %v589 = vadd.f32 %v555, %v581
        %v590 = vadd.f32 %v557, %v581
        %v591 = vadd.f32 %v560, %v581
        %v592 = vadd.f32 %v562, %v581
        %v593 = vadd.f32 %v565, %v581
        %v594 = vadd.f32 %v567, %v581
        %v595 = vadd.f32 %v570, %v581
        %v596 = vadd.f32 %v572, %v581
        %v597 = vadd.f32 %v575, %v581
        %v598 = vadd.f32 %v577, %v581
        %v599 = vmax.f32 %v583, 0.0
        %v600 = vmax.f32 %v584, 0.0
        %v601 = vmax.f32 %v585, 0.0
        %v602 = vmax.f32 %v586, 0.0
        %v603 = vmax.f32 %v587, 0.0
        %v604 = vmax.f32 %v588, 0.0
        %v605 = vmax.f32 %v589, 0.0
        %v606 = vmax.f32 %v590, 0.0
        %v607 = vmax.f32 %v591, 0.0
        %v608 = vmax.f32 %v592, 0.0
        %v609 = vmax.f32 %v593, 0.0
        %v610 = vmax.f32 %v594, 0.0
        %v611 = vmax.f32 %v595, 0.0
        %v612 = vmax.f32 %v596, 0.0
        %v613 = vmax.f32 %v597, 0.0
        %v614 = vmax.f32 %v598, 0.0
        %v615 = vpack.c.bf16 %v600, %v599
        %v616 = vpack.c.bf16 %v602, %v601
        %v617 = vpack.c.bf16 %v604, %v603
        %v618 = vpack.c.bf16 %v606, %v605
        %v619 = vpack.c.bf16 %v608, %v607
        %v620 = vpack.c.bf16 %v610, %v609
        %v621 = vpack.c.bf16 %v612, %v611
        %v622 = vpack.c.bf16 %v614, %v613
        %v623 = vld [vmem:[%s5] sm:$0xf]
        %v624 = vld [vmem:[%s5 + $0x4] sm:$0xf]
        %v625 = vld [vmem:[%s5 + $0x8] sm:$0xf]
        %v626 = vld [vmem:[%s5 + $0xc] sm:$0xf]
        %v627 = vld [vmem:[%s5 + $0x10] sm:$0xf]
        %v628 = vld [vmem:[%s5 + $0x14] sm:$0xf]
        %v629 = vld [vmem:[%s5 + $0x18] sm:$0xf]
        %v630 = vld [vmem:[%s5 + $0x1c] sm:$0xf]
        %v631 = vld [vmem:[%s5 + $0x20] sm:$0xf]
        %v632 = vld [vmem:[%s5 + $0x24] sm:$0xf]
        %v633 = vld [vmem:[%s5 + $0x28] sm:$0xf]
        %v634 = vld [vmem:[%s5 + $0x2c] sm:$0xf]
        %v635 = vld [vmem:[%s5 + $0x30] sm:$0xf]
        %v636 = vld [vmem:[%s5 + $0x34] sm:$0xf]
        %v637 = vld [vmem:[%s5 + $0x38] sm:$0xf]
        %v638 = vld [vmem:[%s5 + $0x3c] sm:$0xf]
        %v639 = vld [vmem:[%s6] sm:$0x1]
        %v641 = vperm.slane %v639, 0
        %v659 = vunpack.c.l.b16 %v623
        %v660 = vunpack.c.l.b16 %v624
        %v661 = vunpack.c.l.b16 %v625
        %v662 = vunpack.c.l.b16 %v626
        %v663 = vunpack.c.l.b16 %v627
        %v664 = vunpack.c.l.b16 %v628
        %v665 = vunpack.c.l.b16 %v629
        %v666 = vunpack.c.l.b16 %v630
        %v667 = vunpack.c.l.b16 %v631
        %v668 = vunpack.c.l.b16 %v632
        %v669 = vunpack.c.l.b16 %v633
        %v670 = vunpack.c.l.b16 %v634
        %v671 = vunpack.c.l.b16 %v635
        %v672 = vunpack.c.l.b16 %v636
        %v673 = vunpack.c.l.b16 %v637
        %v674 = vunpack.c.l.b16 %v638
        %v675 = vpack.c.b16 %v660, %v659
        %v676 = vpack.c.b16 %v662, %v661
        %v677 = vpack.c.b16 %v664, %v663
        %v678 = vpack.c.b16 %v666, %v665
        %v679 = vpack.c.b16 %v668, %v667
        %v680 = vpack.c.b16 %v670, %v669
        %v681 = vpack.c.b16 %v672, %v671
        %v682 = vpack.c.b16 %v674, %v673
        %691 = vmatpush.bf16.msra.mxu0 %v682
        %692 = vmatpush.bf16.msra.mxu0 %v681
        %693 = vmatpush.bf16.msra.mxu0 %v680
        %694 = vmatpush.bf16.msra.mxu0 %v679
        %695 = vmatpush.bf16.msra.mxu0 %v678
        %696 = vmatpush.bf16.msra.mxu0 %v677
        %697 = vmatpush.bf16.msra.mxu0 %v676
        %698 = vmatpush.bf16.msra.mxu0 %v675
        %699 = vmatmul.bf16.gmra.mxu0 %v615
        %v700 = vpop.f32.mrf.mxu0
        %v701 = vadd.f32 %v641, %v700
        %v702 = vpop.f32.mrf.mxu0
        %v703 = vadd.f32 %v641, %v702
        %704 = vmatmul.bf16.gmra.mxu0 %v616
        %v705 = vpop.f32.mrf.mxu0
        %v706 = vadd.f32 %v641, %v705
        %v707 = vpop.f32.mrf.mxu0
        %v708 = vadd.f32 %v641, %v707
        %709 = vmatmul.bf16.gmra.mxu0 %v617
        %v710 = vpop.f32.mrf.mxu0
        %v711 = vadd.f32 %v641, %v710
        %v712 = vpop.f32.mrf.mxu0
        %v713 = vadd.f32 %v641, %v712
        %714 = vmatmul.bf16.gmra.mxu0 %v618
        %v715 = vpop.f32.mrf.mxu0
        %v716 = vadd.f32 %v641, %v715
        %v717 = vpop.f32.mrf.mxu0
        %v718 = vadd.f32 %v641, %v717
        %719 = vmatmul.bf16.gmra.mxu0 %v619
        %v720 = vpop.f32.mrf.mxu0
        %v721 = vadd.f32 %v641, %v720
        %v722 = vpop.f32.mrf.mxu0
        %v723 = vadd.f32 %v641, %v722
        %724 = vmatmul.bf16.gmra.mxu0 %v620
        %v725 = vpop.f32.mrf.mxu0
        %v726 = vadd.f32 %v641, %v725
        %v727 = vpop.f32.mrf.mxu0
        %v728 = vadd.f32 %v641, %v727
        %729 = vmatmul.bf16.gmra.mxu0 %v621
        %v730 = vpop.f32.mrf.mxu0
        %v731 = vadd.f32 %v641, %v730
        %v732 = vpop.f32.mrf.mxu0
        %v733 = vadd.f32 %v641, %v732
        %734 = vmatmul.bf16.gmra.mxu0 %v622
        %v735 = vpop.f32.mrf.mxu0
        %v736 = vadd.f32 %v641, %v735
        %v737 = vpop.f32.mrf.mxu0
        %v738 = vadd.f32 %v641, %v737
        %739 = vdwg.mxu0
        %v740 = vmax.f32 %v701, 0.0
        %v741 = vmax.f32 %v703, 0.0
        %v742 = vmax.f32 %v706, 0.0
        %v743 = vmax.f32 %v708, 0.0
        %v744 = vmax.f32 %v711, 0.0
        %v745 = vmax.f32 %v713, 0.0
        %v746 = vmax.f32 %v716, 0.0
        %v747 = vmax.f32 %v718, 0.0
        %v748 = vmax.f32 %v721, 0.0
        %v749 = vmax.f32 %v723, 0.0
        %v750 = vmax.f32 %v726, 0.0
        %v751 = vmax.f32 %v728, 0.0
        %v752 = vmax.f32 %v731, 0.0
        %v753 = vmax.f32 %v733, 0.0
        %v754 = vmax.f32 %v736, 0.0
        %v755 = vmax.f32 %v738, 0.0
        %v756 = vpack.c.bf16 %v741, %v740
        %v757 = vpack.c.bf16 %v743, %v742
        %v758 = vpack.c.bf16 %v745, %v744
        %v759 = vpack.c.bf16 %v747, %v746
        %v760 = vpack.c.bf16 %v749, %v748
        %v761 = vpack.c.bf16 %v751, %v750
        %v762 = vpack.c.bf16 %v753, %v752
        %v763 = vpack.c.bf16 %v755, %v754
        %v764 = vld [vmem:[%s7] sm:$0xf]
        %v765 = vld [vmem:[%s7 + $0x4] sm:$0xf]
        %v766 = vld [vmem:[%s7 + $0x8] sm:$0xf]
        %v767 = vld [vmem:[%s7 + $0xc] sm:$0xf]
        %v768 = vld [vmem:[%s7 + $0x10] sm:$0xf]
        %v769 = vld [vmem:[%s7 + $0x14] sm:$0xf]
        %v770 = vld [vmem:[%s7 + $0x18] sm:$0xf]
        %v771 = vld [vmem:[%s7 + $0x1c] sm:$0xf]
        %v772 = vld [vmem:[%s7 + $0x20] sm:$0xf]
        %v773 = vld [vmem:[%s7 + $0x24] sm:$0xf]
        %v774 = vld [vmem:[%s7 + $0x28] sm:$0xf]
        %v775 = vld [vmem:[%s7 + $0x2c] sm:$0xf]
        %v776 = vld [vmem:[%s7 + $0x30] sm:$0xf]
        %v777 = vld [vmem:[%s7 + $0x34] sm:$0xf]
        %v778 = vld [vmem:[%s7 + $0x38] sm:$0xf]
        %v779 = vld [vmem:[%s7 + $0x3c] sm:$0xf]
        %v780 = vld [vmem:[%s8] sm:$0x1]
        %v782 = vperm.slane %v780, 0
        %v800 = vunpack.c.l.b16 %v764
        %v801 = vunpack.c.l.b16 %v765
        %v802 = vunpack.c.l.b16 %v766
        %v803 = vunpack.c.l.b16 %v767
        %v804 = vunpack.c.l.b16 %v768
        %v805 = vunpack.c.l.b16 %v769
        %v806 = vunpack.c.l.b16 %v770
        %v807 = vunpack.c.l.b16 %v771
        %v808 = vunpack.c.l.b16 %v772
        %v809 = vunpack.c.l.b16 %v773
        %v810 = vunpack.c.l.b16 %v774
        %v811 = vunpack.c.l.b16 %v775
        %v812 = vunpack.c.l.b16 %v776
        %v813 = vunpack.c.l.b16 %v777
        %v814 = vunpack.c.l.b16 %v778
        %v815 = vunpack.c.l.b16 %v779
        %v816 = vpack.c.b16 %v801, %v800
        %v817 = vpack.c.b16 %v803, %v802
        %v818 = vpack.c.b16 %v805, %v804
        %v819 = vpack.c.b16 %v807, %v806
        %v820 = vpack.c.b16 %v809, %v808
        %v821 = vpack.c.b16 %v811, %v810
        %v822 = vpack.c.b16 %v813, %v812
        %v823 = vpack.c.b16 %v815, %v814
        %832 = vmatpush.bf16.msra.mxu0 %v823
        %833 = vmatpush.bf16.msra.mxu0 %v822
        %834 = vmatpush.bf16.msra.mxu0 %v821
        %835 = vmatpush.bf16.msra.mxu0 %v820
        %836 = vmatpush.bf16.msra.mxu0 %v819
        %837 = vmatpush.bf16.msra.mxu0 %v818
        %838 = vmatpush.bf16.msra.mxu0 %v817
        %839 = vmatpush.bf16.msra.mxu0 %v816
        %840 = vmatmul.bf16.gmra.mxu0 %v756
        %v841 = vpop.f32.mrf.mxu0
        %v842 = vadd.f32 %v782, %v841
        %v843 = vpop.f32.mrf.mxu0
        %v844 = vadd.f32 %v782, %v843
        %845 = vmatmul.bf16.gmra.mxu0 %v757
        %v846 = vpop.f32.mrf.mxu0
        %v847 = vadd.f32 %v782, %v846
        %v848 = vpop.f32.mrf.mxu0
        %v849 = vadd.f32 %v782, %v848
        %850 = vmatmul.bf16.gmra.mxu0 %v758
        %v851 = vpop.f32.mrf.mxu0
        %v852 = vadd.f32 %v782, %v851
        %v853 = vpop.f32.mrf.mxu0
        %v854 = vadd.f32 %v782, %v853
        %855 = vmatmul.bf16.gmra.mxu0 %v759
        %v856 = vpop.f32.mrf.mxu0
        %v857 = vadd.f32 %v782, %v856
        %v858 = vpop.f32.mrf.mxu0
        %v859 = vadd.f32 %v782, %v858
        %860 = vmatmul.bf16.gmra.mxu0 %v760
        %v861 = vpop.f32.mrf.mxu0
        %v862 = vadd.f32 %v782, %v861
        %v863 = vpop.f32.mrf.mxu0
        %v864 = vadd.f32 %v782, %v863
        %865 = vmatmul.bf16.gmra.mxu0 %v761
        %v866 = vpop.f32.mrf.mxu0
        %v867 = vadd.f32 %v782, %v866
        %v868 = vpop.f32.mrf.mxu0
        %v869 = vadd.f32 %v782, %v868
        %870 = vmatmul.bf16.gmra.mxu0 %v762
        %v871 = vpop.f32.mrf.mxu0
        %v872 = vadd.f32 %v782, %v871
        %v873 = vpop.f32.mrf.mxu0
        %v874 = vadd.f32 %v782, %v873
        %875 = vmatmul.bf16.gmra.mxu0 %v763
        %v876 = vpop.f32.mrf.mxu0
        %v877 = vadd.f32 %v782, %v876
        %v878 = vpop.f32.mrf.mxu0
        %v879 = vadd.f32 %v782, %v878
        %880 = vdwg.mxu0
        %881 = vst [vmem:[%s342] sm:$0xff] %v842
        %882 = vst [vmem:[%s342 + $0x8] sm:$0xff] %v844
        %883 = vst [vmem:[%s342 + $0x10] sm:$0xff] %v847
        %884 = vst [vmem:[%s342 + $0x18] sm:$0xff] %v849
        %885 = vst [vmem:[%s342 + $0x20] sm:$0xff] %v852
        %886 = vst [vmem:[%s342 + $0x28] sm:$0xff] %v854
        %887 = vst [vmem:[%s342 + $0x30] sm:$0xff] %v857
        %888 = vst [vmem:[%s342 + $0x38] sm:$0xff] %v859
        %889 = vst [vmem:[%s342 + $0x40] sm:$0xff] %v862
        %890 = vst [vmem:[%s342 + $0x48] sm:$0xff] %v864
        %891 = vst [vmem:[%s342 + $0x50] sm:$0xff] %v867
        %892 = vst [vmem:[%s342 + $0x58] sm:$0xff] %v869
        %893 = vst [vmem:[%s342 + $0x60] sm:$0xff] %v872
        %894 = vst [vmem:[%s342 + $0x68] sm:$0xff] %v874
        %895 = vst [vmem:[%s342 + $0x70] sm:$0xff] %v877
        %896 = vst [vmem:[%s342 + $0x78] sm:$0xff] %v879
        %s897 = sand.u32 %s230, 1
        %s898 = scalar_lea.sflag [#allocation3], %s897
        %s899 = sand.u32 %s230, 1
        %s900 = smul.addr %s899, 128
        %s901 = scalar_lea.vmem [#allocation2], %s900
        // Predicated region
        $region57: #{tpu_custom_call.1} parent=55 // pred_check
          %p902 = pneg %p240
        $region58: #{tpu_custom_call.1} parent=55 // pred_check_branch
          %904 = sbr.rel (%p902) target = $region60
        $region59: #{tpu_custom_call.1} parent=55 // pred_region
          %s905 = smul.u32 16, %s23
          %907 = vsyncadd %s898, 0
          %s908 = smul.addr %s905, 8
          %s909 = scalar_lea.hbm %s9, %s908
          %s910 = sshll.u32 %s901, 4
          %s911 = int_to_ptr.vmem [resolvable:$true] %s910
          %s912 = sshll.u32 %s909, 4
          %s913 = int_to_ptr.hbm [resolvable:$true] %s912
          %918 = dma.vmem_to_hbm [thread:$0]  %s911, 2048, %s913, %s898, 128, 128, 8
        $region60: #{tpu_custom_call.1} parent=55 // pred_fallthru
          _
      $region56: #{tpu_custom_call.1} parent=5 // pred_fallthru
        _
      %p919 = scmp.le.s32.totalorder 2, %s18
      // Predicated region
      $region61: #{tpu_custom_call.1} parent=5 // pred_check
        %p920 = pneg %p919
      $region62: #{tpu_custom_call.1} parent=5 // pred_check_branch
        %922 = sbr.rel (%p920) target = $region64
      $region63: #{tpu_custom_call.1} parent=5 // pred_region
        %s923 = ssub.s32 %s18, 2
        // Predicated region
        $region65: #{tpu_custom_call.1} parent=63 // pred_check
          %p924 = pneg %p246
        $region66: #{tpu_custom_call.1} parent=63 // pred_check_branch
          %926 = sbr.rel (%p924) target = $region68
        $region67: #{tpu_custom_call.1} parent=63 // pred_region
          %s927 = sand.u32 %s231, 1
          %s928 = scalar_lea.sflag [#allocation3], %s927
          %s929 = sand.u32 %s231, 1
          %s930 = smul.addr %s929, 128
          %s931 = scalar_lea.vmem [#allocation2], %s930
          %933 = dma.done %s928, 2048
        $region68: #{tpu_custom_call.1} parent=63 // pred_fallthru
          _
      $region64: #{tpu_custom_call.1} parent=5 // pred_fallthru
        _
    $region6: #{tpu_custom_call.1} parent=1 // loop_footer
      %s22 = sadd.s32 1, %s18
    $region7: #{tpu_custom_call.1} parent=1 // loop_footer_branch
      %17 = sbr.rel target = $region3
    $region8: #{tpu_custom_call.1} parent=1 // loop_exit
      _
    %934 = vsyncpa [#allocation3], 1
    %s935 = scalar_lea.sflag [#allocation3], 1
    %936 = vsyncpa %s935, 1

</llo_original>
